<compile_context>
chip_gen: v7x
topology: tpu7x:2x2x1
jax: 0.10.0
libtpu: 0.0.40
codegen_flags: <defaults>
</compile_context>

<pallas_src>
import jax
import jax.numpy as jnp
from jax.experimental import pallas as pl
from jax.experimental.pallas import tpu as pltpu

P_DROP = 0.1
_SCALE = 1.0 / (1.0 - P_DROP)
# drop iff hash_u32 < round(p * 2^32)
_THRESHOLD_U32 = int(round(P_DROP * (2 ** 32)))


def _dropout_kernel(seed_ref, x_ref, o_ref):
    i = pl.program_id(0)
    tr, cols = x_ref.shape

    # Global element index (independent of the tiling -> reproducible mask).
    row = jax.lax.broadcasted_iota(jnp.int32, (tr, cols), 0) + i * tr
    col = jax.lax.broadcasted_iota(jnp.int32, (tr, cols), 1)
    idx = (row * cols + col).astype(jnp.uint32)

    # Stateless counter-based RNG: mix seed into the counter, then apply the
    # lowbias32 avalanche finalizer (pure VPU integer ops, hidden under DMA).
    seed = seed_ref[0].astype(jnp.uint32)
    h = idx + seed * jnp.uint32(0x9E3779B9)
    h = h ^ (h >> 16)
    h = h * jnp.uint32(0x7FEB352D)
    h = h ^ (h >> 15)
    h = h * jnp.uint32(0x846CA68B)
    h = h ^ (h >> 16)
    keep = h >= jnp.uint32(_THRESHOLD_U32)

    x = x_ref[...]
    scale = jnp.asarray(_SCALE, dtype=x.dtype)
    o_ref[...] = jnp.where(keep, x * scale, jnp.zeros((), dtype=x.dtype))


def _choose_tile_rows(rows, cols, itemsize, *, max_tile_bytes=2 << 20, min_steps=2):
    """Largest divisor of `rows` that is a multiple of 8 (or == rows), fits the
    VMEM tile budget, and leaves at least `min_steps` grid steps if possible."""
    bytes_per_row = cols * itemsize
    fallback = None
    for tr in range(rows, 0, -1):
        if rows % tr:
            continue
        if tr != rows and tr % 8 != 0:
            continue
        if tr * bytes_per_row > max_tile_bytes:
            continue
        if rows // tr >= min_steps:
            return tr
        if fallback is None:
            fallback = tr
    return fallback if fallback is not None else rows


def dropout_pallas(x, seed=0, *, training=True):
    """Dropout(p=0.1) matching torch.nn.Dropout training-mode semantics."""
    if not training:
        return x  # eval-mode identity path

    orig_shape = x.shape
    cols = orig_shape[-1]
    x2d = x.reshape(-1, cols)
    rows = x2d.shape[0]

    tile_rows = _choose_tile_rows(rows, cols, jnp.dtype(x.dtype).itemsize)
    grid = (rows // tile_rows,)
    seed_arr = jnp.asarray([seed], dtype=jnp.int32)

    out2d = pl.pallas_call(
        _dropout_kernel,
        out_shape=jax.ShapeDtypeStruct((rows, cols), x.dtype),
        grid_spec=pltpu.PrefetchScalarGridSpec(
            num_scalar_prefetch=1,
            grid=grid,
            in_specs=[pl.BlockSpec((tile_rows, cols), lambda i, seed_ref: (i, 0))],
            out_specs=pl.BlockSpec((tile_rows, cols), lambda i, seed_ref: (i, 0)),
        ),
        compiler_params=pltpu.CompilerParams(
            dimension_semantics=("parallel",),
            vmem_limit_bytes=32 * 1024 * 1024,
        ),
        # TODO(synk): if the caller can donate x, add input_output_aliases={1: 0}
        # to write in place; also consider fusing this into the upstream
        # softmax/attention kernel to avoid the standalone HBM round-trip.
    )(seed_arr, x2d)

    return out2d.reshape(orig_shape)


if __name__ == "__main__":
    # Small shape consistent with the module's (batch, heads, seq, seq) input.
    B, H, S1, S2 = 1, 4, 32, 128
    key = jax.random.PRNGKey(0)
    x388 = jax.random.normal(key, (B, H, S1, S2), dtype=jnp.float32)

    x389 = dropout_pallas(x388, seed=0)
    jax.block_until_ready(x389)

    # Sanity checks of dropout semantics: survivors are exactly x * 1/(1-p);
    # dropped fraction is near p.
    zero_mask = x389 == 0.0
    nonzero = ~zero_mask
    ref_scaled = x388 * jnp.float32(_SCALE)
    assert bool(jnp.allclose(x389[nonzero], ref_scaled[nonzero], rtol=1e-6))
    drop_frac = float(jnp.mean(zero_mask.astype(jnp.float32)))
    assert 0.05 < drop_frac < 0.15, f"unexpected drop fraction {drop_frac}"

    print("KERNEL_OK")
</pallas_src>

<mosaic_0001>
module attributes {stable_mosaic.version = 11 : i64} {
  func.func @_dropout_kernel(%arg0: i32, %arg1: memref<1xi32, #tpu.memory_space<smem>>, %arg2: memref<64x128xf32, #tpu.memory_space<vmem>>, %arg3: memref<64x128xf32, #tpu.memory_space<vmem>>) attributes {dimension_semantics = [#tpu.dimension_semantics<parallel>], iteration_bounds = array<i64: 2>, scalar_prefetch = 1 : i64, scratch_operands = 0 : i64, tpu.core_type = #tpu.core_type<tc>, window_params = [{transform_indices = @transform_0, window_bounds = array<i64: 64, 128>}, {transform_indices = @transform_1, window_bounds = array<i64: 64, 128>}]} {
    %0 = tpu.iota {dimensions = array<i32: 0>} : vector<64x128xi32>
    %c64_i32 = arith.constant 64 : i32
    %1 = arith.muli %arg0, %c64_i32 : i32
    %2 = vector.broadcast %1 : i32 to vector<64x128xi32>
    %3 = arith.addi %0, %2 : vector<64x128xi32>
    %4 = tpu.iota {dimensions = array<i32: 1>} : vector<64x128xi32>
    %c128_i32 = arith.constant 128 : i32
    %5 = vector.broadcast %c128_i32 : i32 to vector<64x128xi32>
    %6 = arith.muli %3, %5 : vector<64x128xi32>
    %7 = arith.addi %6, %4 : vector<64x128xi32>
    %c0 = arith.constant 0 : index
    %8 = memref.load %arg1[%c0] : memref<1xi32, #tpu.memory_space<smem>>
    %c-1640531527_i32 = arith.constant -1640531527 : i32
    %9 = arith.muli %8, %c-1640531527_i32 : i32
    %10 = vector.broadcast %9 : i32 to vector<64x128xi32>
    %11 = arith.addi %7, %10 : vector<64x128xi32>
    %c16_i32 = arith.constant 16 : i32
    %12 = vector.broadcast %c16_i32 : i32 to vector<64x128xi32>
    %13 = arith.shrui %11, %12 : vector<64x128xi32>
    %14 = arith.xori %11, %13 : vector<64x128xi32>
    %c2146121005_i32 = arith.constant 2146121005 : i32
    %15 = vector.broadcast %c2146121005_i32 : i32 to vector<64x128xi32>
    %16 = arith.muli %14, %15 : vector<64x128xi32>
    %c15_i32 = arith.constant 15 : i32
    %17 = vector.broadcast %c15_i32 : i32 to vector<64x128xi32>
    %18 = arith.shrui %16, %17 : vector<64x128xi32>
    %19 = arith.xori %16, %18 : vector<64x128xi32>
    %c-2073254261_i32 = arith.constant -2073254261 : i32
    %20 = vector.broadcast %c-2073254261_i32 : i32 to vector<64x128xi32>
    %21 = arith.muli %19, %20 : vector<64x128xi32>
    %c16_i32_0 = arith.constant 16 : i32
    %22 = vector.broadcast %c16_i32_0 : i32 to vector<64x128xi32>
    %23 = arith.shrui %21, %22 : vector<64x128xi32>
    %24 = arith.xori %21, %23 : vector<64x128xi32>
    %c429496730_i32 = arith.constant 429496730 : i32
    %25 = vector.broadcast %c429496730_i32 : i32 to vector<64x128xi32>
    %26 = arith.cmpi uge, %24, %25 : vector<64x128xi32>
    %c0_1 = arith.constant 0 : index
    %c0_2 = arith.constant 0 : index
    %27 = vector.load %arg2[%c0_1, %c0_2] : memref<64x128xf32, #tpu.memory_space<vmem>>, vector<64x128xf32>
    %cst = arith.constant 1.11111116 : f32
    %28 = vector.broadcast %cst : f32 to vector<64x128xf32>
    %29 = arith.mulf %27, %28 : vector<64x128xf32>
    %cst_3 = arith.constant 0.000000e+00 : f32
    %30 = vector.broadcast %cst_3 : f32 to vector<64x128xf32>
    %31 = arith.select %26, %29, %30 : vector<64x128xi1>, vector<64x128xf32>
    %c0_4 = arith.constant 0 : index
    %c0_5 = arith.constant 0 : index
    %32 = vector.load %arg3[%c0_4, %c0_5] : memref<64x128xf32, #tpu.memory_space<vmem>>, vector<64x128xf32>
    tpu.vector_store %arg3[%c0_4, %c0_5], %31 {strides = array<i32>} : memref<64x128xf32, #tpu.memory_space<vmem>>, vector<64x128xf32>,
    return
  }
  func.func @transform_0(%arg0: i32, %arg1: memref<1xi32, #tpu.memory_space<smem>>) -> (i32, i32) {
    %c0_i32 = arith.constant 0 : i32
    %c0_i32_0 = arith.constant 0 : i32
    return %arg0, %c0_i32 : i32, i32
  }
  func.func @transform_1(%arg0: i32, %arg1: memref<1xi32, #tpu.memory_space<smem>>) -> (i32, i32) {
    %c0_i32 = arith.constant 0 : i32
    %c0_i32_0 = arith.constant 0 : i32
    return %arg0, %c0_i32 : i32, i32
  }
}

</mosaic_0001>

<llo_original>
// kernel: tpu_custom_call.1
$region0: #{tpu_custom_call.1}
  #allocation0 [shape = 'u32[]', space=smem, size = 0x4, offset = 0x4, fixed_abs, tag = 'smem constant byte address 0x4 - core index']
  #allocation1 [shape = 'u32[144,128]{1,0:T(1,128)}', space=vmem, size = 0x12000, scoped, tag = 'internal scratch']
  #allocation2 [shape = 's32[1]{0}', space=sflag, size = 0x4, scoped, tag = 'scoped memory for tpu_custom_call.1']
  #allocation3 [shape = 's32[1]{0:T(128)S(6)}', space=smem, size = 0x200, scoped, tag = 'prefetched SMEM operand 0']
  %s0 = inlined_call_operand.<no memory space> [shape: s32[1], index: 0, kind: input, shape index: {}]
  %s1 = inlined_call_operand.hbm [shape: f32[128,128], index: 1, kind: input, shape index: {}]
  %s2 = inlined_call_operand.hbm [shape: f32[128,128], index: 2, kind: output, shape index: {}]
  %s3 = sld [smem:[#allocation0]]
  $region41: #{tpu_custom_call.1} parent=0
    _
  %s5 = ssub.s32 1, %s3
  %s6 = scalar_select 0, %s5, %s3
  %7 = sst [smem:[#allocation3]] %s0
  $region1: #{tpu_custom_call.1} parent=0
    #allocation4 [shape = 'u8[65536]{0}', space=vmem, size = 0x10000, scoped, tag = 'input window, operand 1']
    #allocation5 [shape = 's32[2]{0}', space=sflag, size = 0x8, scoped, tag = 'scoped memory for tpu_custom_call.1']
    #allocation6 [shape = 's32[2]{0}', space=sflag, size = 0x8, scoped, tag = 'scoped memory for tpu_custom_call.1']
    #allocation7 [shape = 'u8[65536]{0}', space=vmem, size = 0x10000, scoped, tag = 'output window, operand 0']
    %8 = vsyncpa [#allocation5], 0
    %s9 = scalar_lea.sflag [#allocation5], 1
    %10 = vsyncpa %s9, 0
    %11 = vsyncpa [#allocation6], 0
    %s12 = scalar_lea.sflag [#allocation6], 1
    %13 = vsyncpa %s12, 0
    loop: start=0, step=1, limit=4
    $region2: #{tpu_custom_call.1} parent=1 // loop_pre_header
      _
    $region3: #{tpu_custom_call.1} parent=1 // loop_header
      %s15 = sphi 0, %s19
      %p16 = scmp.ge.s32.totalorder %s15, 4
      %s25 = sphi 0, %s27
      %s28 = sphi 0, %s25
      %s29 = sphi 0, %s28
      %s45 = sphi 0, %s29
      %s51 = sphi 0, %s53
      %s54 = sphi 0, %s51
      %s55 = sphi 0, %s54
      %s71 = sphi 0, %s55
    $region4: #{tpu_custom_call.1} parent=1 // loop_header_branch
      %18 = sbr.rel (%p16) target = $region8
    $region5: #{tpu_custom_call.1} parent=1 // loop_body
      %s20 = ssub.s32 %s15, 1
      %s21 = ssub.s32 %s15, 2
      %s22 = sadd.s32 %s15, 1
      %s23 = ssub.s32 %s15, %s22
      %p24 = scmp.eq.s32.totalorder %s23, 0
      %s26 = sadd.s32 %s25, 1
      %s27 = scalar_select %p24, %s25, %s26
      %p30 = pneg %p24
      %p31 = scmp.eq.s32.totalorder %s15, 1
      %p32 = por %p30, %p31
      %p33 = scmp.ne.s32.totalorder %s25, %s28
      %p34 = scmp.eq.s32.totalorder %s15, 0
      %p35 = por %p33, %p34
      %p36 = scmp.ne.s32.totalorder %s25, %s28
      %p37 = scmp.eq.s32.totalorder %s20, 1
      %p38 = por %p36, %p37
      %p39 = scmp.ne.s32.totalorder %s28, %s29
      %p40 = scmp.eq.s32.totalorder %s20, 0
      %p41 = por %p39, %p40
      %p42 = scmp.ne.s32.totalorder %s28, %s29
      %p43 = scmp.eq.s32.totalorder %s21, 1
      %p44 = por %p42, %p43
      %p46 = scmp.ne.s32.totalorder %s29, %s45
      %p47 = scmp.eq.s32.totalorder %s21, 0
      %p48 = por %p46, %p47
      %s49 = ssub.s32 %s15, %s22
      %p50 = scmp.eq.s32.totalorder %s49, 0
      %s52 = sadd.s32 %s51, 1
      %s53 = scalar_select %p50, %s51, %s52
      %p56 = pneg %p50
      %p57 = scmp.eq.s32.totalorder %s15, 1
      %p58 = por %p56, %p57
      %p59 = scmp.ne.s32.totalorder %s51, %s54
      %p60 = scmp.eq.s32.totalorder %s15, 0
      %p61 = por %p59, %p60
      %p62 = scmp.ne.s32.totalorder %s51, %s54
      %p63 = scmp.eq.s32.totalorder %s20, 1
      %p64 = por %p62, %p63
      %p65 = scmp.ne.s32.totalorder %s54, %s55
      %p66 = scmp.eq.s32.totalorder %s20, 0
      %p67 = por %p65, %p66
      %p68 = scmp.ne.s32.totalorder %s54, %s55
      %p69 = scmp.eq.s32.totalorder %s21, 1
      %p70 = por %p68, %p69
      %p72 = scmp.ne.s32.totalorder %s55, %s71
      %p73 = scmp.eq.s32.totalorder %s21, 0
      %p74 = por %p72, %p73
      %p75 = scmp.le.s32.totalorder 1, %s15
      %p76 = scmp.lt.s32.totalorder %s15, 3
      %p77 = pnand %p75, %p76
      %p78 = pneg %p77
      // Predicated region
      $region9: #{tpu_custom_call.1} parent=5 // pred_check
        _
      $region10: #{tpu_custom_call.1} parent=5 // pred_check_branch
        %80 = sbr.rel (%p77) target = $region12
      $region11: #{tpu_custom_call.1} parent=5 // pred_region
        %s81 = ssub.s32 %s15, 1
      $region12: #{tpu_custom_call.1} parent=5 // pred_fallthru
        _
      %p82 = scmp.lt.s32.totalorder %s15, 2
      // Predicated region
      $region13: #{tpu_custom_call.1} parent=5 // pred_check
        %p83 = pneg %p82
      $region14: #{tpu_custom_call.1} parent=5 // pred_check_branch
        %85 = sbr.rel (%p83) target = $region16
      $region15: #{tpu_custom_call.1} parent=5 // pred_region
        // Predicated region
        $region17: #{tpu_custom_call.1} parent=15 // pred_check
          %p86 = pneg %p35
        $region18: #{tpu_custom_call.1} parent=15 // pred_check_branch
          %88 = sbr.rel (%p86) target = $region20
        $region19: #{tpu_custom_call.1} parent=15 // pred_region
          %s89 = sand.u32 %s25, 1
          %s90 = scalar_lea.sflag [#allocation5], %s89
          %s91 = sand.u32 %s25, 1
          %s92 = smul.addr %s91, 64
          %s93 = scalar_lea.vmem [#allocation4], %s92
          %s94 = smul.u32 8, %s15
          %s96 = ssub.s32 1024, 1024
          %97 = vsyncadd %s90, %s96
          %s98 = smul.addr %s94, 128
          %s99 = scalar_lea.hbm %s1, %s98
          %s100 = sshll.u32 %s93, 4
          %s101 = int_to_ptr.vmem [resolvable:$true] %s100
          %106 = dma.hbm_to_vmem [thread:$0]  %s99, 1024, %s101, %s90, 128, 128, 8
        $region20: #{tpu_custom_call.1} parent=15 // pred_fallthru
          _
      $region16: #{tpu_custom_call.1} parent=5 // pred_fallthru
        _
      %p107 = scmp.le.s32.totalorder 1, %s15
      %p108 = scmp.lt.s32.totalorder %s15, 3
      %p109 = pnand %p107, %p108
      %p110 = pneg %p109
      // Predicated region
      $region21: #{tpu_custom_call.1} parent=5 // pred_check
        _
      $region22: #{tpu_custom_call.1} parent=5 // pred_check_branch
        %112 = sbr.rel (%p109) target = $region24
      $region23: #{tpu_custom_call.1} parent=5 // pred_region
        %s113 = ssub.s32 %s15, 1
        %s114 = sand.u32 %s28, 1
        %s115 = scalar_lea.sflag [#allocation5], %s114
        %s116 = sand.u32 %s28, 1
        %s117 = smul.addr %s116, 64
        %s118 = scalar_lea.vmem [#allocation4], %s117
        // Predicated region
        $region25: #{tpu_custom_call.1} parent=23 // pred_check
          %p119 = pneg %p41
        $region26: #{tpu_custom_call.1} parent=23 // pred_check_branch
          %121 = sbr.rel (%p119) target = $region28
        $region27: #{tpu_custom_call.1} parent=23 // pred_region
          %122 = dma.done %s115, 1024
        $region28: #{tpu_custom_call.1} parent=23 // pred_fallthru
          _
        %s123 = sand.u32 %s28, 1
        %s124 = scalar_lea.sflag [#allocation5], %s123
        %s125 = sand.u32 %s28, 1
        %s126 = smul.addr %s125, 64
        %s127 = scalar_lea.vmem [#allocation4], %s126
        %p128 = pneg %p41
        %p129 = pneg %p38
        %p130 = pneg %p67
        %p131 = pneg %p64
        %s132 = sand.u32 %s54, 1
        %s133 = scalar_lea.sflag [#allocation6], %s132
        %s134 = sand.u32 %s54, 1
        %s135 = smul.addr %s134, 64
        %s136 = scalar_lea.vmem [#allocation7], %s135
        %s137 = smul.u32 8, %s20
        %s138 = smul.u32 8, %s20
        %v139 = vlaneseq
        %v140 = vshrl.u32 %v139, 7
        %v141 = vadd.s32 %v140, 8
        %v142 = vadd.s32 %v140, 16
        %v143 = vadd.s32 %v140, 24
        %v144 = vadd.s32 %v140, 32
        %v145 = vadd.s32 %v140, 40
        %v146 = vadd.s32 %v140, 48
        %v147 = vadd.s32 %v140, 56
        %s148 = smul.u32 %s20, 64
        %v149 = vstv %s148
        %v150 = vadd.s32 %v140, %v149
        %v151 = vadd.s32 %v141, %v149
        %v152 = vadd.s32 %v142, %v149
        %v153 = vadd.s32 %v143, %v149
        %v154 = vadd.s32 %v144, %v149
        %v155 = vadd.s32 %v145, %v149
        %v156 = vadd.s32 %v146, %v149
        %v157 = vadd.s32 %v147, %v149
        %v158 = vlaneseq
        %v159 = vand.u32 %v158, 127
        %v160 = vmul.u32 %v150, 128
        %v161 = vmul.u32 %v151, 128
        %v162 = vmul.u32 %v152, 128
        %v163 = vmul.u32 %v153, 128
        %v164 = vmul.u32 %v154, 128
        %v165 = vmul.u32 %v155, 128
        %v166 = vmul.u32 %v156, 128
        %v167 = vmul.u32 %v157, 128
        %v168 = vadd.s32 %v160, %v159
        %v169 = vadd.s32 %v161, %v159
        %v170 = vadd.s32 %v162, %v159
        %v171 = vadd.s32 %v163, %v159
        %v172 = vadd.s32 %v164, %v159
        %v173 = vadd.s32 %v165, %v159
        %v174 = vadd.s32 %v166, %v159
        %v175 = vadd.s32 %v167, %v159
        %s176 = sld [smem:[#allocation3]]
        %s177 = smul.u32 %s176, 2654435769
        %v178 = vstv %s177
        %v179 = vadd.s32 %v168, %v178
        %v180 = vadd.s32 %v169, %v178
        %v181 = vadd.s32 %v170, %v178
        %v182 = vadd.s32 %v171, %v178
        %v183 = vadd.s32 %v172, %v178
        %v184 = vadd.s32 %v173, %v178
        %v185 = vadd.s32 %v174, %v178
        %v186 = vadd.s32 %v175, %v178
        %v187 = vshrl.u32 %v179, 16
        %v188 = vshrl.u32 %v180, 16
        %v189 = vshrl.u32 %v181, 16
        %v190 = vshrl.u32 %v182, 16
        %v191 = vshrl.u32 %v183, 16
        %v192 = vshrl.u32 %v184, 16
        %v193 = vshrl.u32 %v185, 16
        %v194 = vshrl.u32 %v186, 16
        %v195 = vxor.u32 %v179, %v187
        %v196 = vxor.u32 %v180, %v188
        %v197 = vxor.u32 %v181, %v189
        %v198 = vxor.u32 %v182, %v190
        %v199 = vxor.u32 %v183, %v191
        %v200 = vxor.u32 %v184, %v192
        %v201 = vxor.u32 %v185, %v193
        %v202 = vxor.u32 %v186, %v194
        %v203 = vmul.u32 %v195, 2146121005
        %v204 = vmul.u32 %v196, 2146121005
        %v205 = vmul.u32 %v197, 2146121005
        %v206 = vmul.u32 %v198, 2146121005
        %v207 = vmul.u32 %v199, 2146121005
        %v208 = vmul.u32 %v200, 2146121005
        %v209 = vmul.u32 %v201, 2146121005
        %v210 = vmul.u32 %v202, 2146121005
        %v211 = vshrl.u32 %v203, 15
        %v212 = vshrl.u32 %v204, 15
        %v213 = vshrl.u32 %v205, 15
        %v214 = vshrl.u32 %v206, 15
        %v215 = vshrl.u32 %v207, 15
        %v216 = vshrl.u32 %v208, 15
        %v217 = vshrl.u32 %v209, 15
        %v218 = vshrl.u32 %v210, 15
        %v219 = vxor.u32 %v203, %v211
        %v220 = vxor.u32 %v204, %v212
        %v221 = vxor.u32 %v205, %v213
        %v222 = vxor.u32 %v206, %v214
        %v223 = vxor.u32 %v207, %v215
        %v224 = vxor.u32 %v208, %v216
        %v225 = vxor.u32 %v209, %v217
        %v226 = vxor.u32 %v210, %v218
        %v227 = vmul.u32 %v219, 2221713035
        %v228 = vmul.u32 %v220, 2221713035
        %v229 = vmul.u32 %v221, 2221713035
        %v230 = vmul.u32 %v222, 2221713035
        %v231 = vmul.u32 %v223, 2221713035
        %v232 = vmul.u32 %v224, 2221713035
        %v233 = vmul.u32 %v225, 2221713035
        %v234 = vmul.u32 %v226, 2221713035
        %v235 = vshrl.u32 %v227, 16
        %v236 = vshrl.u32 %v228, 16
        %v237 = vshrl.u32 %v229, 16
        %v238 = vshrl.u32 %v230, 16
        %v239 = vshrl.u32 %v231, 16
        %v240 = vshrl.u32 %v232, 16
        %v241 = vshrl.u32 %v233, 16
        %v242 = vshrl.u32 %v234, 16
        %v243 = vxor.u32 %v227, %v235
        %v244 = vxor.u32 %v228, %v236
        %v245 = vxor.u32 %v229, %v237
        %v246 = vxor.u32 %v230, %v238
        %v247 = vxor.u32 %v231, %v239
        %v248 = vxor.u32 %v232, %v240
        %v249 = vxor.u32 %v233, %v241
        %v250 = vxor.u32 %v234, %v242
        %vm251 = vcmp.ge.u32.totalorder %v243, 429496730
        %vm252 = vcmp.ge.u32.totalorder %v244, 429496730
        %vm253 = vcmp.ge.u32.totalorder %v245, 429496730
        %vm254 = vcmp.ge.u32.totalorder %v246, 429496730
        %vm255 = vcmp.ge.u32.totalorder %v247, 429496730
        %vm256 = vcmp.ge.u32.totalorder %v248, 429496730
        %vm257 = vcmp.ge.u32.totalorder %v249, 429496730
        %vm258 = vcmp.ge.u32.totalorder %v250, 429496730
        %v259 = vld [vmem:[%s118] sm:$0xff]
        %v260 = vld [vmem:[%s118 + $0x8] sm:$0xff]
        %v261 = vld [vmem:[%s118 + $0x10] sm:$0xff]
        %v262 = vld [vmem:[%s118 + $0x18] sm:$0xff]
        %v263 = vld [vmem:[%s118 + $0x20] sm:$0xff]
        %v264 = vld [vmem:[%s118 + $0x28] sm:$0xff]
        %v265 = vld [vmem:[%s118 + $0x30] sm:$0xff]
        %v266 = vld [vmem:[%s118 + $0x38] sm:$0xff]
        %v267 = vmul.f32 %v259, 1.1111112
        %v268 = vmul.f32 %v260, 1.1111112
        %v269 = vmul.f32 %v261, 1.1111112
        %v270 = vmul.f32 %v262, 1.1111112
        %v271 = vmul.f32 %v263, 1.1111112
        %v272 = vmul.f32 %v264, 1.1111112
        %v273 = vmul.f32 %v265, 1.1111112
        %v274 = vmul.f32 %v266, 1.1111112
        %v275 = vsel %vm251, %v267, 0.0
        %v276 = vsel %vm252, %v268, 0.0
        %v277 = vsel %vm253, %v269, 0.0
        %v278 = vsel %vm254, %v270, 0.0
        %v279 = vsel %vm255, %v271, 0.0
        %v280 = vsel %vm256, %v272, 0.0
        %v281 = vsel %vm257, %v273, 0.0
        %v282 = vsel %vm258, %v274, 0.0
        %283 = vst [vmem:[%s136] sm:$0xff] %v275
        %284 = vst [vmem:[%s136 + $0x8] sm:$0xff] %v276
        %285 = vst [vmem:[%s136 + $0x10] sm:$0xff] %v277
        %286 = vst [vmem:[%s136 + $0x18] sm:$0xff] %v278
        %287 = vst [vmem:[%s136 + $0x20] sm:$0xff] %v279
        %288 = vst [vmem:[%s136 + $0x28] sm:$0xff] %v280
        %289 = vst [vmem:[%s136 + $0x30] sm:$0xff] %v281
        %290 = vst [vmem:[%s136 + $0x38] sm:$0xff] %v282
        %s291 = sand.u32 %s54, 1
        %s292 = scalar_lea.sflag [#allocation6], %s291
        %s293 = sand.u32 %s54, 1
        %s294 = smul.addr %s293, 64
        %s295 = scalar_lea.vmem [#allocation7], %s294
        // Predicated region
        $region29: #{tpu_custom_call.1} parent=23 // pred_check
          %p296 = pneg %p64
        $region30: #{tpu_custom_call.1} parent=23 // pred_check_branch
          %298 = sbr.rel (%p296) target = $region32
        $region31: #{tpu_custom_call.1} parent=23 // pred_region
          %s299 = smul.u32 8, %s20
          %s301 = ssub.s32 1024, 1024
          %302 = vsyncadd %s292, %s301
          %s303 = smul.addr %s299, 128
          %s304 = scalar_lea.hbm %s2, %s303
          %s305 = sshll.u32 %s295, 4
          %s306 = int_to_ptr.vmem [resolvable:$true] %s305
          %311 = dma.vmem_to_hbm [thread:$0]  %s306, 1024, %s304, %s292, 128, 128, 8
        $region32: #{tpu_custom_call.1} parent=23 // pred_fallthru
          _
      $region24: #{tpu_custom_call.1} parent=5 // pred_fallthru
        _
      %p312 = scmp.le.s32.totalorder 2, %s15
      // Predicated region
      $region33: #{tpu_custom_call.1} parent=5 // pred_check
        %p313 = pneg %p312
      $region34: #{tpu_custom_call.1} parent=5 // pred_check_branch
        %315 = sbr.rel (%p313) target = $region36
      $region35: #{tpu_custom_call.1} parent=5 // pred_region
        %s316 = ssub.s32 %s15, 2
        // Predicated region
        $region37: #{tpu_custom_call.1} parent=35 // pred_check
          %p317 = pneg %p70
        $region38: #{tpu_custom_call.1} parent=35 // pred_check_branch
          %319 = sbr.rel (%p317) target = $region40
        $region39: #{tpu_custom_call.1} parent=35 // pred_region
          %s320 = sand.u32 %s55, 1
          %s321 = scalar_lea.sflag [#allocation6], %s320
          %s322 = sand.u32 %s55, 1
          %s323 = smul.addr %s322, 64
          %s324 = scalar_lea.vmem [#allocation7], %s323
          %325 = dma.done %s321, 1024
        $region40: #{tpu_custom_call.1} parent=35 // pred_fallthru
          _
      $region36: #{tpu_custom_call.1} parent=5 // pred_fallthru
        _
    $region6: #{tpu_custom_call.1} parent=1 // loop_footer
      %s19 = sadd.s32 1, %s15
    $region7: #{tpu_custom_call.1} parent=1 // loop_footer_branch
      %14 = sbr.rel target = $region3
    $region8: #{tpu_custom_call.1} parent=1 // loop_exit
      _
    %326 = vsyncpa [#allocation5], 1
    %s327 = scalar_lea.sflag [#allocation5], 1
    %328 = vsyncpa %s327, 1
    %329 = vsyncpa [#allocation6], 1
    %s330 = scalar_lea.sflag [#allocation6], 1
    %331 = vsyncpa %s330, 1

</llo_original>
